<compile_context>
chip_gen: v7x
topology: tpu7x:2x2x1
jax: 0.10.0
libtpu: 0.0.40
codegen_flags: <defaults>
</compile_context>

<pallas_src>
import functools

import jax
import jax.numpy as jnp
from jax.experimental import pallas as pl
from jax.experimental.pallas import tpu as pltpu

EPS = 1e-5      # nn.BatchNorm1d default eps
LANES = 128     # TPU lane width


def _round_up(x, m):
    return (x + m - 1) // m * m


def _nbytes(a):
    return int(a.size) * a.dtype.itemsize


# ----------------------------------------------------------------------------- kernels

def _conv3_taps(src_ref, lout, c_p, stride):
    """Pack the three k=3 conv taps along the lane axis -> (lout, 3*c_p).

    src_ref holds the zero-padded sequence with stride phases folded into the last
    axis: src[r, p*c_p + c] == x_padded[stride*r + p, c]. Tap k of output row l reads
    padded row stride*l + k, i.e. src row l + k//stride, phase k%stride.
    """
    taps = []
    for k in range(3):
        r, p = divmod(k, stride)
        taps.append(src_ref[r:r + lout, p * c_p:(p + 1) * c_p])
    return jnp.concatenate(taps, axis=1)


def _stats1_kernel(x_ref, w1_ref, wd_ref, stats_ref, *,
                   lout, cin_p, stride, has_downsample):
    """Pass 1: per-channel sum / sum-of-squares of conv1 (and the 1x1 downsample conv)."""
    @pl.when(pl.program_id(0) == 0)
    def _init():
        stats_ref[...] = jnp.zeros_like(stats_ref)

    packed = _conv3_taps(x_ref, lout, cin_p, stride)                      # (L, 3*Cin_p)
    y1 = jnp.dot(packed, w1_ref[...], preferred_element_type=jnp.float32)
    s1 = jnp.sum(y1, axis=0, keepdims=True)
    q1 = jnp.sum(y1 * y1, axis=0, keepdims=True)

    if has_downsample:
        r, p = divmod(1, stride)                                          # 1x1 conv tap
        xd = x_ref[r:r + lout, p * cin_p:(p + 1) * cin_p]
        yd = jnp.dot(xd, wd_ref[...], preferred_element_type=jnp.float32)
        sd = jnp.sum(yd, axis=0, keepdims=True)
        qd = jnp.sum(yd * yd, axis=0, keepdims=True)
    else:
        sd = jnp.zeros_like(s1)
        qd = jnp.zeros_like(q1)

    stats_ref[...] += jnp.concatenate([s1, q1, sd, qd], axis=0)


def _bn1_conv2_stats_kernel(x_ref, w1_ref, sc1_ref, sh1_ref, w2_ref,
                            out1_ref, stats2_ref, halo_ref, *,
                            lout, cin_p, cout_p, stride):
    """Pass 2: out1 = relu(bn1(conv1(x))); also accumulate conv2(out1) statistics."""
    @pl.when(pl.program_id(0) == 0)
    def _init():
        stats2_ref[...] = jnp.zeros_like(stats2_ref)

    packed = _conv3_taps(x_ref, lout, cin_p, stride)
    y1 = jnp.dot(packed, w1_ref[...], preferred_element_type=jnp.float32)
    out1 = jnp.maximum(y1 * sc1_ref[...] + sh1_ref[...], 0.0).astype(out1_ref.dtype)
    out1_ref[...] = out1

    # zero-padded halo copy of out1 for conv2's (k=3, pad=1, stride=1) taps
    halo_ref[...] = jnp.zeros_like(halo_ref)
    halo_ref[1:lout + 1, :] = out1

    packed2 = _conv3_taps(halo_ref, lout, cout_p, 1)                      # (L, 3*Cout_p)
    y2 = jnp.dot(packed2, w2_ref[...], preferred_element_type=jnp.float32)
    stats2_ref[...] += jnp.concatenate(
        [jnp.sum(y2, axis=0, keepdims=True),
         jnp.sum(y2 * y2, axis=0, keepdims=True)], axis=0)


def _final_kernel(x_ref, out1_ref, w2_ref, sc2_ref, sh2_ref,
                  wd_ref, scd_ref, shd_ref, out_ref, halo_ref, *,
                  lout, cin_p, cout_p, stride, has_downsample):
    """Pass 3: out = relu(bn2(conv2(out1)) + shortcut)."""
    out1 = out1_ref[...]
    halo_ref[...] = jnp.zeros_like(halo_ref)
    halo_ref[1:lout + 1, :] = out1

    packed2 = _conv3_taps(halo_ref, lout, cout_p, 1)
    y2 = jnp.dot(packed2, w2_ref[...], preferred_element_type=jnp.float32)
    out2 = y2 * sc2_ref[...] + sh2_ref[...]

    r, p = divmod(1, stride)
    x_tap = x_ref[r:r + lout, p * cin_p:(p + 1) * cin_p]
    if has_downsample:
        yd = jnp.dot(x_tap, wd_ref[...], preferred_element_type=jnp.float32)
        identity = yd * scd_ref[...] + shd_ref[...]
    else:
        identity = x_tap.astype(jnp.float32)        # stride == 1, Cin == Cout

    out_ref[...] = jnp.maximum(out2 + identity, 0.0).astype(out_ref.dtype)


# ----------------------------------------------------------------------------- wrapper

def residual_block(x_ncl, params, stride=1, compute_dtype=jnp.float32):
    """x_ncl: (N, Cin, L) float32 (PyTorch Conv1d layout). Returns (N, Cout, Lout) f32."""
    N, Cin, L = x_ncl.shape
    Cout = params['w1'].shape[0]
    has_ds = (stride != 1) or (Cin != Cout)
    Lout = (L + 2 - 3) // stride + 1

    cin_p = _round_up(Cin, LANES)
    cout_p = _round_up(Cout, LANES)

    # ---- layout glue (cheap XLA ops): NLC, conv pad, lane pad, fold stride phases ----
    x = jnp.transpose(x_ncl, (0, 2, 1)).astype(jnp.float32)
    lpad_s = _round_up(L + 2, stride)
    x = jnp.pad(x, ((0, 0), (1, lpad_s - L - 1), (0, cin_p - Cin)))
    lrows = lpad_s // stride
    x1 = x.reshape(N, lrows, stride * cin_p).astype(compute_dtype)

    # ---- pack weights: tap-major (3*Cin_p, Cout_p); biases dropped (cancelled by BN) ----
    def pack3(w, cin_pp, cout_pp):
        co, ci, _ = w.shape
        wp = jnp.zeros((3, cin_pp, cout_pp), jnp.float32)
        wp = wp.at[:, :ci, :co].set(jnp.transpose(w, (2, 1, 0)))
        return wp.reshape(3 * cin_pp, cout_pp)

    w1p = pack3(params['w1'], cin_p, cout_p).astype(compute_dtype)
    w2p = pack3(params['w2'], cout_p, cout_p).astype(compute_dtype)
    wdp = jnp.zeros((cin_p, cout_p), jnp.float32)
    if has_ds:
        wdp = wdp.at[:Cin, :Cout].set(jnp.transpose(params['wd'][:, :, 0], (1, 0)))
    wdp = wdp.astype(compute_dtype)

    def pad_vec(v):
        return jnp.zeros((1, cout_p), jnp.float32).at[0, :Cout].set(v)

    g1, be1 = pad_vec(params['g1']), pad_vec(params['be1'])
    g2, be2 = pad_vec(params['g2']), pad_vec(params['be2'])
    gd, bed = pad_vec(params['gd']), pad_vec(params['bed'])

    # ---- specs -------------------------------------------------------------------
    grid = (N,)
    x_spec = pl.BlockSpec((None, lrows, stride * cin_p), lambda n: (n, 0, 0))

    def act_spec():
        return pl.BlockSpec((None, Lout, cout_p), lambda n: (n, 0, 0))

    def rep(shape):     # replicated / accumulator block (same block every grid step)
        return pl.BlockSpec(shape, lambda n: (0,) * len(shape))

    def cparams(sem):
        return pltpu.CompilerParams(dimension_semantics=(sem,),
                                    vmem_limit_bytes=48 * 1024 * 1024)

    conv1_flops = 2 * N * Lout * (3 * cin_p) * cout_p
    conv2_flops = 2 * N * Lout * (3 * cout_p) * cout_p
    ds_flops = 2 * N * Lout * cin_p * cout_p if has_ds else 0
    act_bytes = N * Lout * cout_p * jnp.dtype(compute_dtype).itemsize

    # ---- pass 1: conv1 (+ downsample) batch statistics ----------------------------
    stats1 = pl.pallas_call(
        functools.partial(_stats1_kernel, lout=Lout, cin_p=cin_p, stride=stride,
                          has_downsample=has_ds),
        grid=grid,
        in_specs=[x_spec, rep((3 * cin_p, cout_p)), rep((cin_p, cout_p))],
        out_specs=rep((4, cout_p)),
        out_shape=jax.ShapeDtypeStruct((4, cout_p), jnp.float32),
        compiler_params=cparams("arbitrary"),
        cost_estimate=pl.CostEstimate(
            flops=conv1_flops + ds_flops, transcendentals=0,
            bytes_accessed=_nbytes(x1) + _nbytes(w1p) + _nbytes(wdp)),
    )(x1, w1p, wdp)

    # ---- fold BN into per-channel scale/shift (tiny per-channel math, f32) --------
    cnt = float(N * Lout)

    def fold(s, q, gamma, beta):
        mean = s / cnt
        var = jnp.maximum(q / cnt - mean * mean, 0.0)      # biased var (training BN)
        scale = gamma * jax.lax.rsqrt(var + EPS)
        shift = beta - mean * scale
        return scale, shift

    sc1, sh1 = fold(stats1[0:1], stats1[1:2], g1, be1)
    scd, shd = fold(stats1[2:3], stats1[3:4], gd, bed)

    # ---- pass 2: apply bn1+relu, write out1, accumulate conv2 statistics ----------
    out1, stats2 = pl.pallas_call(
        functools.partial(_bn1_conv2_stats_kernel, lout=Lout, cin_p=cin_p,
                          cout_p=cout_p, stride=stride),
        grid=grid,
        in_specs=[x_spec, rep((3 * cin_p, cout_p)), rep((1, cout_p)),
                  rep((1, cout_p)), rep((3 * cout_p, cout_p))],
        out_specs=(act_spec(), rep((2, cout_p))),
        out_shape=(jax.ShapeDtypeStruct((N, Lout, cout_p), compute_dtype),
                   jax.ShapeDtypeStruct((2, cout_p), jnp.float32)),
        scratch_shapes=[pltpu.VMEM((Lout + 2, cout_p), compute_dtype)],
        compiler_params=cparams("arbitrary"),
        cost_estimate=pl.CostEstimate(
            flops=conv1_flops + conv2_flops, transcendentals=0,
            bytes_accessed=_nbytes(x1) + _nbytes(w1p) + _nbytes(w2p) + act_bytes),
    )(x1, w1p, sc1, sh1, w2p)

    sc2, sh2 = fold(stats2[0:1], stats2[1:2], g2, be2)

    # ---- pass 3: bn2 apply + shortcut + relu --------------------------------------
    out_padded = pl.pallas_call(
        functools.partial(_final_kernel, lout=Lout, cin_p=cin_p, cout_p=cout_p,
                          stride=stride, has_downsample=has_ds),
        grid=grid,
        in_specs=[x_spec, act_spec(),
                  rep((3 * cout_p, cout_p)), rep((1, cout_p)), rep((1, cout_p)),
                  rep((cin_p, cout_p)), rep((1, cout_p)), rep((1, cout_p))],
        out_specs=pl.BlockSpec((None, Lout, cout_p), lambda n: (n, 0, 0)),
        out_shape=jax.ShapeDtypeStruct((N, Lout, cout_p), jnp.float32),
        scratch_shapes=[pltpu.VMEM((Lout + 2, cout_p), compute_dtype)],
        compiler_params=cparams("parallel"),
        cost_estimate=pl.CostEstimate(
            flops=conv2_flops + ds_flops, transcendentals=0,
            bytes_accessed=_nbytes(x1) + act_bytes + N * Lout * cout_p * 4),
    )(x1, out1, w2p, sc2, sh2, wdp, scd, shd)

    # strip lane padding, back to PyTorch NCL layout
    return jnp.transpose(out_padded[:, :, :Cout], (0, 2, 1))


# ----------------------------------------------------------------------------- test glue

def init_params(key, cin, cout):
    ks = jax.random.split(key, 12)
    n = lambda k, s: 0.1 * jax.random.normal(k, s, jnp.float32)
    return {
        'w1': n(ks[0], (cout, cin, 3)),   'b1': n(ks[1], (cout,)),
        'g1': 1.0 + n(ks[2], (cout,)),    'be1': n(ks[3], (cout,)),
        'w2': n(ks[4], (cout, cout, 3)),  'b2': n(ks[5], (cout,)),
        'g2': 1.0 + n(ks[6], (cout,)),    'be2': n(ks[7], (cout,)),
        'wd': n(ks[8], (cout, cin, 1)),   'bd': n(ks[9], (cout,)),
        'gd': 1.0 + n(ks[10], (cout,)),   'bed': n(ks[11], (cout,)),
    }


def reference(x, p, stride=1):
    """Pure-JAX f32 reference of the PyTorch forward (training-mode BN, with conv biases)."""
    def conv1d(x, w, b, s, pad):
        y = jax.lax.conv_general_dilated(x, w, (s,), [(pad, pad)],
                                         dimension_numbers=('NCH', 'OIH', 'NCH'))
        return y + b[None, :, None]

    def bn(x, g, b):
        m = jnp.mean(x, axis=(0, 2), keepdims=True)
        v = jnp.mean((x - m) ** 2, axis=(0, 2), keepdims=True)
        return (x - m) * jax.lax.rsqrt(v + EPS) * g[None, :, None] + b[None, :, None]

    out = jax.nn.relu(bn(conv1d(x, p['w1'], p['b1'], stride, 1), p['g1'], p['be1']))
    out = bn(conv1d(out, p['w2'], p['b2'], 1, 1), p['g2'], p['be2'])
    cin, cout = p['w1'].shape[1], p['w1'].shape[0]
    if stride != 1 or cin != cout:
        idn = bn(conv1d(x, p['wd'], p['bd'], stride, 0), p['gd'], p['bed'])
    else:
        idn = x
    return jax.nn.relu(out + idn)


if __name__ == "__main__":
    key = jax.random.PRNGKey(0)
    N, L = 2, 16
    # (Cin, Cout, stride): projection shortcut, identity shortcut, strided downsample
    cases = [(4, 8, 1), (8, 8, 1), (4, 8, 2)]

    for cin, cout, stride in cases:
        key, kx, kp = jax.random.split(key, 3)
        x = jax.random.normal(kx, (N, cin, L), jnp.float32)
        params = init_params(kp, cin, cout)
        ref = reference(x, params, stride)

        out = jax.block_until_ready(residual_block(x, params, stride))
        assert out.shape == ref.shape, (out.shape, ref.shape)
        err = float(jnp.max(jnp.abs(out - ref)))
        assert jnp.allclose(out, ref, atol=1e-3, rtol=1e-3), (cin, cout, stride, "f32", err)

    # bf16 MXU path (f32 accumulation, f32 BN statistics) on the last case: loose tolerance.
    out_bf16 = jax.block_until_ready(
        residual_block(x, params, stride, compute_dtype=jnp.bfloat16))
    err = float(jnp.max(jnp.abs(out_bf16 - ref)))
    assert jnp.allclose(out_bf16, ref, atol=1e-1, rtol=1e-1), ("bf16", err)

    print("KERNEL_OK")
</pallas_src>

<mosaic_0001>
module attributes {stable_mosaic.version = 11 : i64} {
  func.func @_stats1_kernel(%arg0: i32, %arg1: memref<1x18x128xf32, #tpu.memory_space<vmem>>, %arg2: memref<384x128xf32, #tpu.memory_space<vmem>>, %arg3: memref<128x128xf32, #tpu.memory_space<vmem>>, %arg4: memref<4x128xf32, #tpu.memory_space<vmem>>) attributes {dimension_semantics = [#tpu.dimension_semantics<arbitrary>], iteration_bounds = array<i64: 2>, scalar_prefetch = 0 : i64, scratch_operands = 0 : i64, tpu.core_type = #tpu.core_type<tc>, window_params = [{transform_indices = @transform_0, window_bounds = array<i64: 1, 18, 128>}, {pipeline_mode = #tpu.pipeline_mode<synchronous>, transform_indices = @transform_1, window_bounds = array<i64: 384, 128>}, {pipeline_mode = #tpu.pipeline_mode<synchronous>, transform_indices = @transform_2, window_bounds = array<i64: 128, 128>}, {pipeline_mode = #tpu.pipeline_mode<synchronous>, transform_indices = @transform_3, window_bounds = array<i64: 4, 128>}]} {
    %c0_i32 = arith.constant 0 : i32
    %0 = arith.cmpi eq, %arg0, %c0_i32 : i32
    %1 = arith.extui %0 : i1 to i32
    %c0_i32_0 = arith.constant 0 : i32
    %2 = arith.cmpi ne, %1, %c0_i32_0 : i32
    scf.if %2 {
      %cst_23 = arith.constant 0.000000e+00 : f32
      %30 = vector.broadcast %cst_23 : f32 to vector<4x128xf32>
      %c0_24 = arith.constant 0 : index
      %c0_25 = arith.constant 0 : index
      %31 = vector.load %arg4[%c0_24, %c0_25] : memref<4x128xf32, #tpu.memory_space<vmem>>, vector<4x128xf32>
      tpu.vector_store %arg4[%c0_24, %c0_25], %30 {strides = array<i32>} : memref<4x128xf32, #tpu.memory_space<vmem>>, vector<4x128xf32>,
    } else {
    }
    %c0 = arith.constant 0 : index
    %c0_1 = arith.constant 0 : index
    %c0_2 = arith.constant 0 : index
    %3 = vector.load %arg1[%c0, %c0_1, %c0_2] : memref<1x18x128xf32, #tpu.memory_space<vmem>>, vector<1x16x128xf32>
    %4 = vector.shape_cast %3 : vector<1x16x128xf32> to vector<16x128xf32>
    %c0_3 = arith.constant 0 : index
    %c1 = arith.constant 1 : index
    %c0_4 = arith.constant 0 : index
    %5 = vector.load %arg1[%c0_3, %c1, %c0_4] : memref<1x18x128xf32, #tpu.memory_space<vmem>>, vector<1x16x128xf32>
    %6 = vector.shape_cast %5 : vector<1x16x128xf32> to vector<16x128xf32>
    %c0_5 = arith.constant 0 : index
    %c2 = arith.constant 2 : index
    %c0_6 = arith.constant 0 : index
    %7 = vector.load %arg1[%c0_5, %c2, %c0_6] : memref<1x18x128xf32, #tpu.memory_space<vmem>>, vector<1x16x128xf32>
    %8 = vector.shape_cast %7 : vector<1x16x128xf32> to vector<16x128xf32>
    %9 = tpu.concatenate %4, %6, %8 in 1 : vector<16x128xf32>, vector<16x128xf32>, vector<16x128xf32> -> vector<16x384xf32>
    %c0_7 = arith.constant 0 : index
    %c0_8 = arith.constant 0 : index
    %10 = vector.load %arg2[%c0_7, %c0_8] : memref<384x128xf32, #tpu.memory_space<vmem>>, vector<384x128xf32>
    %cst = arith.constant dense<0.000000e+00> : vector<16x128xf32>
    %11 = tpu.matmul %9, %10, %cst {dimension_numbers = #tpu.dot_dimension_numbers<[1], [0], [0], [1], [0, 0, 1, 1], [], []>} : vector<16x384xf32>, vector<384x128xf32>, vector<16x128xf32> -> vector<16x128xf32>
    %cst_9 = arith.constant dense<0.000000e+00> : vector<128xf32>
    %12 = vector.multi_reduction <add>, %11, %cst_9 [0] : vector<16x128xf32> to vector<128xf32>
    %13 = vector.shape_cast %12 : vector<128xf32> to vector<1x128xf32>
    %14 = arith.mulf %11, %11 : vector<16x128xf32>
    %cst_10 = arith.constant dense<0.000000e+00> : vector<128xf32>
    %15 = vector.multi_reduction <add>, %14, %cst_10 [0] : vector<16x128xf32> to vector<128xf32>
    %16 = vector.shape_cast %15 : vector<128xf32> to vector<1x128xf32>
    %c0_11 = arith.constant 0 : index
    %c1_12 = arith.constant 1 : index
    %c0_13 = arith.constant 0 : index
    %17 = vector.load %arg1[%c0_11, %c1_12, %c0_13] : memref<1x18x128xf32, #tpu.memory_space<vmem>>, vector<1x16x128xf32>
    %18 = vector.shape_cast %17 : vector<1x16x128xf32> to vector<16x128xf32>
    %c0_14 = arith.constant 0 : index
    %c0_15 = arith.constant 0 : index
    %19 = vector.load %arg3[%c0_14, %c0_15] : memref<128x128xf32, #tpu.memory_space<vmem>>, vector<128x128xf32>
    %cst_16 = arith.constant dense<0.000000e+00> : vector<16x128xf32>
    %20 = tpu.matmul %18, %19, %cst_16 {dimension_numbers = #tpu.dot_dimension_numbers<[1], [0], [0], [1], [0, 0, 1, 1], [], []>} : vector<16x128xf32>, vector<128x128xf32>, vector<16x128xf32> -> vector<16x128xf32>
    %cst_17 = arith.constant dense<0.000000e+00> : vector<128xf32>
    %21 = vector.multi_reduction <add>, %20, %cst_17 [0] : vector<16x128xf32> to vector<128xf32>
    %22 = vector.shape_cast %21 : vector<128xf32> to vector<1x128xf32>
    %23 = arith.mulf %20, %20 : vector<16x128xf32>
    %cst_18 = arith.constant dense<0.000000e+00> : vector<128xf32>
    %24 = vector.multi_reduction <add>, %23, %cst_18 [0] : vector<16x128xf32> to vector<128xf32>
    %25 = vector.shape_cast %24 : vector<128xf32> to vector<1x128xf32>
    %c0_19 = arith.constant 0 : index
    %c0_20 = arith.constant 0 : index
    %26 = vector.load %arg4[%c0_19, %c0_20] : memref<4x128xf32, #tpu.memory_space<vmem>>, vector<4x128xf32>
    %27 = tpu.concatenate %13, %16, %22, %25 in 0 : vector<1x128xf32>, vector<1x128xf32>, vector<1x128xf32>, vector<1x128xf32> -> vector<4x128xf32>
    %28 = arith.addf %26, %27 : vector<4x128xf32>
    %c0_21 = arith.constant 0 : index
    %c0_22 = arith.constant 0 : index
    %29 = vector.load %arg4[%c0_21, %c0_22] : memref<4x128xf32, #tpu.memory_space<vmem>>, vector<4x128xf32>
    tpu.vector_store %arg4[%c0_21, %c0_22], %28 {strides = array<i32>} : memref<4x128xf32, #tpu.memory_space<vmem>>, vector<4x128xf32>,
    return
  }
  func.func @transform_0(%arg0: i32) -> (i32, i32, i32) {
    %c0_i32 = arith.constant 0 : i32
    %c0_i32_0 = arith.constant 0 : i32
    %c0_i32_1 = arith.constant 0 : i32
    return %arg0, %c0_i32, %c0_i32_0 : i32, i32, i32
  }
  func.func @transform_1(%arg0: i32) -> (i32, i32) {
    %c0_i32 = arith.constant 0 : i32
    %c0_i32_0 = arith.constant 0 : i32
    %c0_i32_1 = arith.constant 0 : i32
    return %c0_i32, %c0_i32_0 : i32, i32
  }
  func.func @transform_2(%arg0: i32) -> (i32, i32) {
    %c0_i32 = arith.constant 0 : i32
    %c0_i32_0 = arith.constant 0 : i32
    %c0_i32_1 = arith.constant 0 : i32
    return %c0_i32, %c0_i32_0 : i32, i32
  }
  func.func @transform_3(%arg0: i32) -> (i32, i32) {
    %c0_i32 = arith.constant 0 : i32
    %c0_i32_0 = arith.constant 0 : i32
    %c0_i32_1 = arith.constant 0 : i32
    return %c0_i32, %c0_i32_0 : i32, i32
  }
}

</mosaic_0001>

<llo_original>
// kernel: tpu_custom_call.1
$region0: #{tpu_custom_call.1}
  #allocation0 [shape = 'u32[]', space=smem, size = 0x4, offset = 0x4, fixed_abs, tag = 'smem constant byte address 0x4 - core index']
  #allocation1 [shape = 'u32[144,128]{1,0:T(1,128)}', space=vmem, size = 0x12000, scoped, tag = 'internal scratch']
  %s0 = inlined_call_operand.vmem [shape: f32[2,18,128], index: 0, kind: input, shape index: {}]
  %s1 = inlined_call_operand.hbm [shape: f32[384,128], index: 1, kind: input, shape index: {}]
  %s2 = inlined_call_operand.hbm [shape: f32[128,128], index: 2, kind: input, shape index: {}]
  %s3 = inlined_call_operand.hbm [shape: f32[4,128], index: 3, kind: output, shape index: {}]
  %s4 = sld [smem:[#allocation0]]
  $region57: #{tpu_custom_call.1} parent=0
    _
  %s6 = ssub.s32 1, %s4
  %s7 = scalar_select 0, %s6, %s4
  $region1: #{tpu_custom_call.1} parent=0
    #allocation2 [shape = 'u8[196608]{0}', space=vmem, size = 0x30000, scoped, tag = 'input window, operand 1, single buffered']
    #allocation3 [shape = 's32[2]{0}', space=sflag, size = 0x8, scoped, tag = 'scoped memory for tpu_custom_call.1']
    #allocation4 [shape = 's32[2]{0}', space=sflag, size = 0x8, scoped, tag = 'scoped memory for tpu_custom_call.1']
    #allocation5 [shape = 'u8[65536]{0}', space=vmem, size = 0x10000, scoped, tag = 'input window, operand 2, single buffered']
    #allocation6 [shape = 's32[1]{0}', space=sflag, size = 0x4, scoped, tag = 'scoped memory for tpu_custom_call.1']
    #allocation7 [shape = 'u8[2048]{0}', space=vmem, size = 0x800, scoped, tag = 'output window, operand 0, single buffered']
    %8 = vsyncpa [#allocation3], 0
    %9 = vsyncpa [#allocation6], 0
    %10 = vsyncpa [#allocation4], 0
    loop: start=0, step=1, limit=4
    $region2: #{tpu_custom_call.1} parent=1 // loop_pre_header
      _
    $region3: #{tpu_custom_call.1} parent=1 // loop_header
      %s12 = sphi 0, %s16
      %p13 = scmp.ge.s32.totalorder %s12, 4
      %s22 = sphi 0, %s24
      %s25 = sphi 0, %s22
      %s26 = sphi 0, %s25
      %s42 = sphi 0, %s26
      %s46 = sphi 0, %s46
      %s48 = sphi 0, %s46
      %s49 = sphi 0, %s48
      %s63 = sphi 0, %s49
      %s67 = sphi 0, %s67
      %s69 = sphi 0, %s67
      %s70 = sphi 0, %s69
      %s84 = sphi 0, %s70
      %s88 = sphi 0, %s88
      %s90 = sphi 0, %s88
      %s91 = sphi 0, %s90
      %s105 = sphi 0, %s91
    $region4: #{tpu_custom_call.1} parent=1 // loop_header_branch
      %15 = sbr.rel (%p13) target = $region8
    $region5: #{tpu_custom_call.1} parent=1 // loop_body
      %s17 = ssub.s32 %s12, 1
      %s18 = ssub.s32 %s12, 2
      %s19 = sadd.s32 %s12, 1
      %s20 = ssub.s32 %s12, %s19
      %p21 = scmp.eq.s32.totalorder %s20, 0
      %s23 = sadd.s32 %s22, 1
      %s24 = scalar_select %p21, %s22, %s23
      %p27 = pneg %p21
      %p28 = scmp.eq.s32.totalorder %s12, 1
      %p29 = por %p27, %p28
      %p30 = scmp.ne.s32.totalorder %s22, %s25
      %p31 = scmp.eq.s32.totalorder %s12, 0
      %p32 = por %p30, %p31
      %p33 = scmp.ne.s32.totalorder %s22, %s25
      %p34 = scmp.eq.s32.totalorder %s17, 1
      %p35 = por %p33, %p34
      %p36 = scmp.ne.s32.totalorder %s25, %s26
      %p37 = scmp.eq.s32.totalorder %s17, 0
      %p38 = por %p36, %p37
      %p39 = scmp.ne.s32.totalorder %s25, %s26
      %p40 = scmp.eq.s32.totalorder %s18, 1
      %p41 = por %p39, %p40
      %p43 = scmp.ne.s32.totalorder %s26, %s42
      %p44 = scmp.eq.s32.totalorder %s18, 0
      %p45 = por %p43, %p44
      %s47 = sadd.s32 %s46, 1
      %p50 = scmp.eq.s32.totalorder %s12, 1
      %p51 = scmp.ne.s32.totalorder %s46, %s48
      %p52 = scmp.eq.s32.totalorder %s12, 0
      %p53 = por %p51, %p52
      %p54 = scmp.ne.s32.totalorder %s46, %s48
      %p55 = scmp.eq.s32.totalorder %s17, 1
      %p56 = por %p54, %p55
      %p57 = scmp.ne.s32.totalorder %s48, %s49
      %p58 = scmp.eq.s32.totalorder %s17, 0
      %p59 = por %p57, %p58
      %p60 = scmp.ne.s32.totalorder %s48, %s49
      %p61 = scmp.eq.s32.totalorder %s18, 1
      %p62 = por %p60, %p61
      %p64 = scmp.ne.s32.totalorder %s49, %s63
      %p65 = scmp.eq.s32.totalorder %s18, 0
      %p66 = por %p64, %p65
      %s68 = sadd.s32 %s67, 1
      %p71 = scmp.eq.s32.totalorder %s12, 1
      %p72 = scmp.ne.s32.totalorder %s67, %s69
      %p73 = scmp.eq.s32.totalorder %s12, 0
      %p74 = por %p72, %p73
      %p75 = scmp.ne.s32.totalorder %s67, %s69
      %p76 = scmp.eq.s32.totalorder %s17, 1
      %p77 = por %p75, %p76
      %p78 = scmp.ne.s32.totalorder %s69, %s70
      %p79 = scmp.eq.s32.totalorder %s17, 0
      %p80 = por %p78, %p79
      %p81 = scmp.ne.s32.totalorder %s69, %s70
      %p82 = scmp.eq.s32.totalorder %s18, 1
      %p83 = por %p81, %p82
      %p85 = scmp.ne.s32.totalorder %s70, %s84
      %p86 = scmp.eq.s32.totalorder %s18, 0
      %p87 = por %p85, %p86
      %s89 = sadd.s32 %s88, 1
      %p92 = scmp.eq.s32.totalorder %s12, 1
      %p93 = scmp.ne.s32.totalorder %s88, %s90
      %p94 = scmp.eq.s32.totalorder %s12, 0
      %p95 = por %p93, %p94
      %p96 = scmp.ne.s32.totalorder %s88, %s90
      %p97 = scmp.eq.s32.totalorder %s17, 1
      %p98 = por %p96, %p97
      %p99 = scmp.ne.s32.totalorder %s90, %s91
      %p100 = scmp.eq.s32.totalorder %s17, 0
      %p101 = por %p99, %p100
      %p102 = scmp.ne.s32.totalorder %s90, %s91
      %p103 = scmp.eq.s32.totalorder %s18, 1
      %p104 = por %p102, %p103
      %p106 = scmp.ne.s32.totalorder %s91, %s105
      %p107 = scmp.eq.s32.totalorder %s18, 0
      %p108 = por %p106, %p107
      %p109 = scmp.le.s32.totalorder 1, %s12
      %p110 = scmp.lt.s32.totalorder %s12, 3
      %p111 = pnand %p109, %p110
      %p112 = pneg %p111
      // Predicated region
      $region9: #{tpu_custom_call.1} parent=5 // pred_check
        _
      $region10: #{tpu_custom_call.1} parent=5 // pred_check_branch
        %114 = sbr.rel (%p111) target = $region12
      $region11: #{tpu_custom_call.1} parent=5 // pred_region
        %s115 = ssub.s32 %s12, 1
        // Predicated region
        $region13: #{tpu_custom_call.1} parent=11 // pred_check
          %p116 = pneg %p59
        $region14: #{tpu_custom_call.1} parent=11 // pred_check_branch
          %118 = sbr.rel (%p116) target = $region16
        $region15: #{tpu_custom_call.1} parent=11 // pred_region
          %s120 = ssub.s32 6144, 6144
          %121 = vsyncadd [#allocation3], %s120
          %s122 = sshll.u32 [#allocation2], 4
          %s123 = int_to_ptr.vmem [resolvable:$true] %s122
          %128 = dma.hbm_to_vmem [thread:$0]  %s1, 6144, %s123, [#allocation3], 128, 128, 8
        $region16: #{tpu_custom_call.1} parent=11 // pred_fallthru
          _
        // Predicated region
        $region17: #{tpu_custom_call.1} parent=11 // pred_check
          %p129 = pneg %p80
        $region18: #{tpu_custom_call.1} parent=11 // pred_check_branch
          %131 = sbr.rel (%p129) target = $region20
        $region19: #{tpu_custom_call.1} parent=11 // pred_region
          %s133 = ssub.s32 2048, 2048
          %134 = vsyncadd [#allocation6], %s133
          %s135 = sshll.u32 [#allocation5], 4
          %s136 = int_to_ptr.vmem [resolvable:$true] %s135
          %141 = dma.hbm_to_vmem [thread:$0]  %s2, 2048, %s136, [#allocation6], 128, 128, 8
        $region20: #{tpu_custom_call.1} parent=11 // pred_fallthru
          _
      $region12: #{tpu_custom_call.1} parent=5 // pred_fallthru
        _
      %p142 = scmp.lt.s32.totalorder %s12, 2
      // Predicated region
      $region21: #{tpu_custom_call.1} parent=5 // pred_check
        %p143 = pneg %p142
      $region22: #{tpu_custom_call.1} parent=5 // pred_check_branch
        %145 = sbr.rel (%p143) target = $region24
      $region23: #{tpu_custom_call.1} parent=5 // pred_region
        // Predicated region
        $region25: #{tpu_custom_call.1} parent=23 // pred_check
          %p146 = pneg %p32
        $region26: #{tpu_custom_call.1} parent=23 // pred_check_branch
          %148 = sbr.rel (%p146) target = $region28
        $region27: #{tpu_custom_call.1} parent=23 // pred_region
          %p149 = scmp.lt.s32.totalorder %s12, 1
          %s150 = scalar_select %p149, %s12, 1
          %s151 = smul.addr %s150, 3
          %s152 = smul.addr %s151, 8
          %s153 = scalar_lea.vmem %s0, %s152
        $region28: #{tpu_custom_call.1} parent=23 // pred_fallthru
          _
      $region24: #{tpu_custom_call.1} parent=5 // pred_fallthru
        _
      %p154 = scmp.le.s32.totalorder 1, %s12
      %p155 = scmp.lt.s32.totalorder %s12, 3
      %p156 = pnand %p154, %p155
      %p157 = pneg %p156
      // Predicated region
      $region29: #{tpu_custom_call.1} parent=5 // pred_check
        _
      $region30: #{tpu_custom_call.1} parent=5 // pred_check_branch
        %159 = sbr.rel (%p156) target = $region32
      $region31: #{tpu_custom_call.1} parent=5 // pred_region
        %s160 = ssub.s32 %s12, 1
        // Predicated region
        $region33: #{tpu_custom_call.1} parent=31 // pred_check
          %p161 = pneg %p59
        $region34: #{tpu_custom_call.1} parent=31 // pred_check_branch
          %163 = sbr.rel (%p161) target = $region36
        $region35: #{tpu_custom_call.1} parent=31 // pred_region
          %164 = dma.done [#allocation3], 6144
        $region36: #{tpu_custom_call.1} parent=31 // pred_fallthru
          _
        // Predicated region
        $region37: #{tpu_custom_call.1} parent=31 // pred_check
          %p165 = pneg %p80
        $region38: #{tpu_custom_call.1} parent=31 // pred_check_branch
          %167 = sbr.rel (%p165) target = $region40
        $region39: #{tpu_custom_call.1} parent=31 // pred_region
          %168 = dma.done [#allocation6], 2048
        $region40: #{tpu_custom_call.1} parent=31 // pred_fallthru
          _
        %p169 = scmp.lt.s32.totalorder %s17, 1
        %s170 = scalar_select %p169, %s17, 1
        %s171 = smul.addr %s170, 3
        %s172 = smul.addr %s171, 8
        %s173 = scalar_lea.vmem %s0, %s172
        %p174 = pneg %p38
        %p175 = pneg %p35
        %p176 = pneg %p59
        %p177 = pneg %p56
        %p178 = pneg %p80
        %p179 = pneg %p77
        %p180 = pneg %p101
        %p181 = pneg %p98
        %p182 = scmp.lt.s32.totalorder %s17, 1
        %s183 = scalar_select %p182, %s17, 1
        %s184 = smul.addr %s183, 3
        %s185 = smul.addr %s184, 8
        %s186 = scalar_lea.vmem %s0, %s185
        %p187 = scmp.eq.s32.totalorder %s17, 0
        // Predicated region
        $region41: #{tpu_custom_call.1} parent=31 // pred_check
          %p188 = pneg %p187
        $region42: #{tpu_custom_call.1} parent=31 // pred_check_branch
          %190 = sbr.rel (%p188) target = $region44
        $region43: #{tpu_custom_call.1} parent=31 // pred_region
          %191 = vst [vmem:[#allocation7] sm:$0xf] 0.0
        $region44: #{tpu_custom_call.1} parent=31 // pred_fallthru
          _
        %v192 = vld [vmem:[%s186] sm:$0xff]
        %v193 = vld [vmem:[%s186 + $0x8] sm:$0xff]
        %v194 = vld [vmem:[%s186 + $0x1] sm:$0xff]
        %v195 = vld [vmem:[%s186 + $0x9] sm:$0xff]
        %v196 = vld [vmem:[%s186 + $0x2] sm:$0xff]
        %v197 = vld [vmem:[%s186 + $0xa] sm:$0xff]
        %v198 = vld [vmem:[#allocation2] sm:$0xff]
        %v199 = vld [vmem:[#allocation2 + $0x8] sm:$0xff]
        %v200 = vld [vmem:[#allocation2 + $0x10] sm:$0xff]
        %v201 = vld [vmem:[#allocation2 + $0x18] sm:$0xff]
        %v202 = vld [vmem:[#allocation2 + $0x20] sm:$0xff]
        %v203 = vld [vmem:[#allocation2 + $0x28] sm:$0xff]
        %v204 = vld [vmem:[#allocation2 + $0x30] sm:$0xff]
        %v205 = vld [vmem:[#allocation2 + $0x38] sm:$0xff]
        %v206 = vld [vmem:[#allocation2 + $0x40] sm:$0xff]
        %v207 = vld [vmem:[#allocation2 + $0x48] sm:$0xff]
        %v208 = vld [vmem:[#allocation2 + $0x50] sm:$0xff]
        %v209 = vld [vmem:[#allocation2 + $0x58] sm:$0xff]
        %v210 = vld [vmem:[#allocation2 + $0x60] sm:$0xff]
        %v211 = vld [vmem:[#allocation2 + $0x68] sm:$0xff]
        %v212 = vld [vmem:[#allocation2 + $0x70] sm:$0xff]
        %v213 = vld [vmem:[#allocation2 + $0x78] sm:$0xff]
        %v214 = vld [vmem:[#allocation2 + $0x80] sm:$0xff]
        %v215 = vld [vmem:[#allocation2 + $0x88] sm:$0xff]
        %v216 = vld [vmem:[#allocation2 + $0x90] sm:$0xff]
        %v217 = vld [vmem:[#allocation2 + $0x98] sm:$0xff]
        %v218 = vld [vmem:[#allocation2 + $0xa0] sm:$0xff]
        %v219 = vld [vmem:[#allocation2 + $0xa8] sm:$0xff]
        %v220 = vld [vmem:[#allocation2 + $0xb0] sm:$0xff]
        %v221 = vld [vmem:[#allocation2 + $0xb8] sm:$0xff]
        %v222 = vld [vmem:[#allocation2 + $0xc0] sm:$0xff]
        %v223 = vld [vmem:[#allocation2 + $0xc8] sm:$0xff]
        %v224 = vld [vmem:[#allocation2 + $0xd0] sm:$0xff]
        %v225 = vld [vmem:[#allocation2 + $0xd8] sm:$0xff]
        %v226 = vld [vmem:[#allocation2 + $0xe0] sm:$0xff]
        %v227 = vld [vmem:[#allocation2 + $0xe8] sm:$0xff]
        %v228 = vld [vmem:[#allocation2 + $0xf0] sm:$0xff]
        %v229 = vld [vmem:[#allocation2 + $0xf8] sm:$0xff]
        %v230 = vld [vmem:[#allocation2 + $0x100] sm:$0xff]
        %v231 = vld [vmem:[#allocation2 + $0x108] sm:$0xff]
        %v232 = vld [vmem:[#allocation2 + $0x110] sm:$0xff]
        %v233 = vld [vmem:[#allocation2 + $0x118] sm:$0xff]
        %v234 = vld [vmem:[#allocation2 + $0x120] sm:$0xff]
        %v235 = vld [vmem:[#allocation2 + $0x128] sm:$0xff]
        %v236 = vld [vmem:[#allocation2 + $0x130] sm:$0xff]
        %v237 = vld [vmem:[#allocation2 + $0x138] sm:$0xff]
        %v238 = vld [vmem:[#allocation2 + $0x140] sm:$0xff]
        %v239 = vld [vmem:[#allocation2 + $0x148] sm:$0xff]
        %v240 = vld [vmem:[#allocation2 + $0x150] sm:$0xff]
        %v241 = vld [vmem:[#allocation2 + $0x158] sm:$0xff]
        %v242 = vld [vmem:[#allocation2 + $0x160] sm:$0xff]
        %v243 = vld [vmem:[#allocation2 + $0x168] sm:$0xff]
        %v244 = vld [vmem:[#allocation2 + $0x170] sm:$0xff]
        %v245 = vld [vmem:[#allocation2 + $0x178] sm:$0xff]
        %246 = vmatprep.subr.mxu0 0.0
        %247 = vmatpush1.msra.mxu0 %v198
        %248 = vmatprep.subr.mxu0 0.0
        %249 = vmatpush1.msra.mxu0 %v199
        %250 = vmatprep.subr.mxu0 0.0
        %251 = vmatpush1.msra.mxu0 %v200
        %252 = vmatprep.subr.mxu0 0.0
        %253 = vmatpush1.msra.mxu0 %v201
        %254 = vmatprep.subr.mxu0 0.0
        %255 = vmatpush1.msra.mxu0 %v202
        %256 = vmatprep.subr.mxu0 0.0
        %257 = vmatpush1.msra.mxu0 %v203
        %258 = vmatprep.subr.mxu0 0.0
        %259 = vmatpush1.msra.mxu0 %v204
        %260 = vmatprep.subr.mxu0 0.0
        %261 = vmatpush1.msra.mxu0 %v205
        %262 = vmatprep.subr.mxu0 0.0
        %263 = vmatpush1.msra.mxu0 %v206
        %264 = vmatprep.subr.mxu0 0.0
        %265 = vmatpush1.msra.mxu0 %v207
        %266 = vmatprep.subr.mxu0 0.0
        %267 = vmatpush1.msra.mxu0 %v208
        %268 = vmatprep.subr.mxu0 0.0
        %269 = vmatpush1.msra.mxu0 %v209
        %270 = vmatprep.subr.mxu0 0.0
        %271 = vmatpush1.msra.mxu0 %v210
        %272 = vmatprep.subr.mxu0 0.0
        %273 = vmatpush1.msra.mxu0 %v211
        %274 = vmatprep.subr.mxu0 0.0
        %275 = vmatpush1.msra.mxu0 %v212
        %276 = vmatprep.subr.mxu0 0.0
        %277 = vmatpush1.msra.mxu0 %v213
        %278 = vmatprep.subr.mxu0 0.0
        %279 = vmatpush1.msra.mxu0 %v214
        %280 = vmatprep.subr.mxu0 0.0
        %281 = vmatpush1.msra.mxu0 %v215
        %282 = vmatprep.subr.mxu0 0.0
        %283 = vmatpush1.msra.mxu0 %v216
        %284 = vmatprep.subr.mxu0 0.0
        %285 = vmatpush1.msra.mxu0 %v217
        %286 = vmatprep.subr.mxu0 0.0
        %287 = vmatpush1.msra.mxu0 %v218
        %288 = vmatprep.subr.mxu0 0.0
        %289 = vmatpush1.msra.mxu0 %v219
        %290 = vmatprep.subr.mxu0 0.0
        %291 = vmatpush1.msra.mxu0 %v220
        %292 = vmatprep.subr.mxu0 0.0
        %293 = vmatpush1.msra.mxu0 %v221
        %294 = vmatprep.subr.mxu0 0.0
        %295 = vmatpush1.msra.mxu0 %v222
        %296 = vmatprep.subr.mxu0 0.0
        %297 = vmatpush1.msra.mxu0 %v223
        %298 = vmatprep.subr.mxu0 0.0
        %299 = vmatpush1.msra.mxu0 %v224
        %300 = vmatprep.subr.mxu0 0.0
        %301 = vmatpush1.msra.mxu0 %v225
        %302 = vmatprep.subr.mxu0 0.0
        %303 = vmatpush1.msra.mxu0 %v226
        %304 = vmatprep.subr.mxu0 0.0
        %305 = vmatpush1.msra.mxu0 %v227
        %306 = vmatprep.subr.mxu0 0.0
        %307 = vmatpush1.msra.mxu0 %v228
        %308 = vmatprep.subr.mxu0 0.0
        %309 = vmatpush1.msra.mxu0 %v229
        %310 = vmatprep.mubr.f32.mxu0 %v194
        %311 = vmatmul.mubr.f32.gmra.mrb[0].mxu0 %v192
        %v312 = vpop.f32.mrb[0].mxu0
        %v313 = vadd.f32 0.0, %v312
        %v314 = vpop.f32.mrb[0].mxu0
        %315 = vmatprep.mubr.f32.mxu0 %v195
        %316 = vmatmul.mubr.f32.gmra.mrb[0].mxu0 %v193
        %v317 = vpop.f32.mrb[0].mxu0
        %v318 = vadd.f32 0.0, %v317
        %v319 = vpop.f32.mrb[0].mxu0
        %320 = vdwg.mxu0
        %321 = vmatprep.subr.mxu0 0.0
        %322 = vmatpush1.msra.mxu0 %v230
        %323 = vmatprep.subr.mxu0 0.0
        %324 = vmatpush1.msra.mxu0 %v231
        %325 = vmatprep.subr.mxu0 0.0
        %326 = vmatpush1.msra.mxu0 %v232
        %327 = vmatprep.subr.mxu0 0.0
        %328 = vmatpush1.msra.mxu0 %v233
        %329 = vmatprep.subr.mxu0 0.0
        %330 = vmatpush1.msra.mxu0 %v234
        %331 = vmatprep.subr.mxu0 0.0
        %332 = vmatpush1.msra.mxu0 %v235
        %333 = vmatprep.subr.mxu0 0.0
        %334 = vmatpush1.msra.mxu0 %v236
        %335 = vmatprep.subr.mxu0 0.0
        %336 = vmatpush1.msra.mxu0 %v237
        %337 = vmatprep.subr.mxu0 0.0
        %338 = vmatpush1.msra.mxu0 %v238
        %339 = vmatprep.subr.mxu0 0.0
        %340 = vmatpush1.msra.mxu0 %v239
        %341 = vmatprep.subr.mxu0 0.0
        %342 = vmatpush1.msra.mxu0 %v240
        %343 = vmatprep.subr.mxu0 0.0
        %344 = vmatpush1.msra.mxu0 %v241
        %345 = vmatprep.subr.mxu0 0.0
        %346 = vmatpush1.msra.mxu0 %v242
        %347 = vmatprep.subr.mxu0 0.0
        %348 = vmatpush1.msra.mxu0 %v243
        %349 = vmatprep.subr.mxu0 0.0
        %350 = vmatpush1.msra.mxu0 %v244
        %351 = vmatprep.subr.mxu0 0.0
        %352 = vmatpush1.msra.mxu0 %v245
        %353 = vmatprep.subr.mxu0 0.0
        %354 = vmatpush1.msra.mxu0 0.0
        %355 = vmatprep.subr.mxu0 0.0
        %356 = vmatpush1.msra.mxu0 0.0
        %357 = vmatprep.subr.mxu0 0.0
        %358 = vmatpush1.msra.mxu0 0.0
        %359 = vmatprep.subr.mxu0 0.0
        %360 = vmatpush1.msra.mxu0 0.0
        %361 = vmatprep.subr.mxu0 0.0
        %362 = vmatpush1.msra.mxu0 0.0
        %363 = vmatprep.subr.mxu0 0.0
        %364 = vmatpush1.msra.mxu0 0.0
        %365 = vmatprep.subr.mxu0 0.0
        %366 = vmatpush1.msra.mxu0 0.0
        %367 = vmatprep.subr.mxu0 0.0
        %368 = vmatpush1.msra.mxu0 0.0
        %369 = vmatprep.subr.mxu0 0.0
        %370 = vmatpush1.msra.mxu0 0.0
        %371 = vmatprep.subr.mxu0 0.0
        %372 = vmatpush1.msra.mxu0 0.0
        %373 = vmatprep.subr.mxu0 0.0
        %374 = vmatpush1.msra.mxu0 0.0
        %375 = vmatprep.subr.mxu0 0.0
        %376 = vmatpush1.msra.mxu0 0.0
        %377 = vmatprep.subr.mxu0 0.0
        %378 = vmatpush1.msra.mxu0 0.0
        %379 = vmatprep.subr.mxu0 0.0
        %380 = vmatpush1.msra.mxu0 0.0
        %381 = vmatprep.subr.mxu0 0.0
        %382 = vmatpush1.msra.mxu0 0.0
        %383 = vmatprep.subr.mxu0 0.0
        %384 = vmatpush1.msra.mxu0 0.0
        %385 = vmatprep.mubr.f32.mxu0 0.0
        %386 = vmatmul.mubr.f32.gmra.mrb[0].mxu0 %v196
        %v387 = vpop.f32.mrb[0].mxu0
        %v388 = vadd.f32 %v313, %v387
        %v389 = vpop.f32.mrb[0].mxu0
        %390 = vmatprep.mubr.f32.mxu0 0.0
        %391 = vmatmul.mubr.f32.gmra.mrb[0].mxu0 %v197
        %v392 = vpop.f32.mrb[0].mxu0
        %v393 = vadd.f32 %v318, %v392
        %v394 = vpop.f32.mrb[0].mxu0
        %395 = vdwg.mxu0
        %v396 = vadd.f32 %v388, %v393
        %v397 = vrot.slane %v396, 4
        %v398 = vadd.f32 %v396, %v397
        %v399 = vrot.slane %v398, 2
        %v400 = vadd.f32 %v398, %v399
        %v401 = vrot.slane %v400, 1
        %v402 = vadd.f32 %v400, %v401
        %v403 = vmul.f32 %v388, %v388
        %v404 = vmul.f32 %v393, %v393
        %v405 = vadd.f32 %v403, %v404
        %v406 = vrot.slane %v405, 4
        %v407 = vadd.f32 %v405, %v406
        %v408 = vrot.slane %v407, 2
        %v409 = vadd.f32 %v407, %v408
        %v410 = vrot.slane %v409, 1
        %v411 = vadd.f32 %v409, %v410
        %v412 = vld [vmem:[#allocation5] sm:$0xff]
        %v413 = vld [vmem:[#allocation5 + $0x8] sm:$0xff]
        %v414 = vld [vmem:[#allocation5 + $0x10] sm:$0xff]
        %v415 = vld [vmem:[#allocation5 + $0x18] sm:$0xff]
        %v416 = vld [vmem:[#allocation5 + $0x20] sm:$0xff]
        %v417 = vld [vmem:[#allocation5 + $0x28] sm:$0xff]
        %v418 = vld [vmem:[#allocation5 + $0x30] sm:$0xff]
        %v419 = vld [vmem:[#allocation5 + $0x38] sm:$0xff]
        %v420 = vld [vmem:[#allocation5 + $0x40] sm:$0xff]
        %v421 = vld [vmem:[#allocation5 + $0x48] sm:$0xff]
        %v422 = vld [vmem:[#allocation5 + $0x50] sm:$0xff]
        %v423 = vld [vmem:[#allocation5 + $0x58] sm:$0xff]
        %v424 = vld [vmem:[#allocation5 + $0x60] sm:$0xff]
        %v425 = vld [vmem:[#allocation5 + $0x68] sm:$0xff]
        %v426 = vld [vmem:[#allocation5 + $0x70] sm:$0xff]
        %v427 = vld [vmem:[#allocation5 + $0x78] sm:$0xff]
        %428 = vmatprep.subr.mxu0 0.0
        %429 = vmatpush1.msra.mxu0 %v412
        %430 = vmatprep.subr.mxu0 0.0
        %431 = vmatpush1.msra.mxu0 %v413
        %432 = vmatprep.subr.mxu0 0.0
        %433 = vmatpush1.msra.mxu0 %v414
        %434 = vmatprep.subr.mxu0 0.0
        %435 = vmatpush1.msra.mxu0 %v415
        %436 = vmatprep.subr.mxu0 0.0
        %437 = vmatpush1.msra.mxu0 %v416
        %438 = vmatprep.subr.mxu0 0.0
        %439 = vmatpush1.msra.mxu0 %v417
        %440 = vmatprep.subr.mxu0 0.0
        %441 = vmatpush1.msra.mxu0 %v418
        %442 = vmatprep.subr.mxu0 0.0
        %443 = vmatpush1.msra.mxu0 %v419
        %444 = vmatprep.subr.mxu0 0.0
        %445 = vmatpush1.msra.mxu0 %v420
        %446 = vmatprep.subr.mxu0 0.0
        %447 = vmatpush1.msra.mxu0 %v421
        %448 = vmatprep.subr.mxu0 0.0
        %449 = vmatpush1.msra.mxu0 %v422
        %450 = vmatprep.subr.mxu0 0.0
        %451 = vmatpush1.msra.mxu0 %v423
        %452 = vmatprep.subr.mxu0 0.0
        %453 = vmatpush1.msra.mxu0 %v424
        %454 = vmatprep.subr.mxu0 0.0
        %455 = vmatpush1.msra.mxu0 %v425
        %456 = vmatprep.subr.mxu0 0.0
        %457 = vmatpush1.msra.mxu0 %v426
        %458 = vmatprep.subr.mxu0 0.0
        %459 = vmatpush1.msra.mxu0 %v427
        %460 = vmatprep.subr.mxu0 0.0
        %461 = vmatpush1.msra.mxu0 0.0
        %462 = vmatprep.subr.mxu0 0.0
        %463 = vmatpush1.msra.mxu0 0.0
        %464 = vmatprep.subr.mxu0 0.0
        %465 = vmatpush1.msra.mxu0 0.0
        %466 = vmatprep.subr.mxu0 0.0
        %467 = vmatpush1.msra.mxu0 0.0
        %468 = vmatprep.subr.mxu0 0.0
        %469 = vmatpush1.msra.mxu0 0.0
        %470 = vmatprep.subr.mxu0 0.0
        %471 = vmatpush1.msra.mxu0 0.0
        %472 = vmatprep.subr.mxu0 0.0
        %473 = vmatpush1.msra.mxu0 0.0
        %474 = vmatprep.subr.mxu0 0.0
        %475 = vmatpush1.msra.mxu0 0.0
        %476 = vmatprep.subr.mxu0 0.0
        %477 = vmatpush1.msra.mxu0 0.0
        %478 = vmatprep.subr.mxu0 0.0
        %479 = vmatpush1.msra.mxu0 0.0
        %480 = vmatprep.subr.mxu0 0.0
        %481 = vmatpush1.msra.mxu0 0.0
        %482 = vmatprep.subr.mxu0 0.0
        %483 = vmatpush1.msra.mxu0 0.0
        %484 = vmatprep.subr.mxu0 0.0
        %485 = vmatpush1.msra.mxu0 0.0
        %486 = vmatprep.subr.mxu0 0.0
        %487 = vmatpush1.msra.mxu0 0.0
        %488 = vmatprep.subr.mxu0 0.0
        %489 = vmatpush1.msra.mxu0 0.0
        %490 = vmatprep.subr.mxu0 0.0
        %491 = vmatpush1.msra.mxu0 0.0
        %492 = vmatprep.mubr.f32.mxu0 0.0
        %493 = vmatmul.mubr.f32.gmra.mrb[0].mxu0 %v194
        %v494 = vpop.f32.mrb[0].mxu0
        %v495 = vadd.f32 0.0, %v494
        %v496 = vpop.f32.mrb[0].mxu0
        %497 = vmatprep.mubr.f32.mxu0 0.0
        %498 = vmatmul.mubr.f32.gmra.mrb[0].mxu0 %v195
        %v499 = vpop.f32.mrb[0].mxu0
        %v500 = vadd.f32 0.0, %v499
        %v501 = vpop.f32.mrb[0].mxu0
        %502 = vdwg.mxu0
        %v503 = vadd.f32 %v495, %v500
        %v504 = vrot.slane %v503, 4
        %v505 = vadd.f32 %v503, %v504
        %v506 = vrot.slane %v505, 2
        %v507 = vadd.f32 %v505, %v506
        %v508 = vrot.slane %v507, 1
        %v509 = vadd.f32 %v507, %v508
        %v510 = vmul.f32 %v495, %v495
        %v511 = vmul.f32 %v500, %v500
        %v512 = vadd.f32 %v510, %v511
        %v513 = vrot.slane %v512, 4
        %v514 = vadd.f32 %v512, %v513
        %v515 = vrot.slane %v514, 2
        %v516 = vadd.f32 %v514, %v515
        %v517 = vrot.slane %v516, 1
        %v518 = vadd.f32 %v516, %v517
        %v519 = vld [vmem:[#allocation7] sm:$0xf]
        %vm520 = vcmask 1040384
        %v521 = vsel %vm520, %v402, %v411
        %vm522 = vcmask 1041408
        %v523 = vsel %vm522, %v521, %v509
        %vm524 = vcmask 1042432
        %v525 = vsel %vm524, %v523, %v518
        %v526 = vadd.f32 %v519, %v525
        %527 = vst [vmem:[#allocation7] sm:$0xf] %v526
        // Predicated region
        $region45: #{tpu_custom_call.1} parent=31 // pred_check
          %p528 = pneg %p98
        $region46: #{tpu_custom_call.1} parent=31 // pred_check_branch
          %530 = sbr.rel (%p528) target = $region48
        $region47: #{tpu_custom_call.1} parent=31 // pred_region
          %s532 = ssub.s32 64, 64
          %533 = vsyncadd [#allocation4], %s532
          %s535 = sshll.u32 [#allocation7], 4
          %s536 = int_to_ptr.vmem [resolvable:$true] %s535
          %538 = dma.vmem_to_hbm [thread:$0]  %s536, 64, %s3, [#allocation4]
        $region48: #{tpu_custom_call.1} parent=31 // pred_fallthru
          _
        // Predicated region
        $region49: #{tpu_custom_call.1} parent=31 // pred_check
          %p539 = pneg %p98
        $region50: #{tpu_custom_call.1} parent=31 // pred_check_branch
          %541 = sbr.rel (%p539) target = $region52
        $region51: #{tpu_custom_call.1} parent=31 // pred_region
          %542 = dma.done [#allocation4], 64
        $region52: #{tpu_custom_call.1} parent=31 // pred_fallthru
          _
      $region32: #{tpu_custom_call.1} parent=5 // pred_fallthru
        _
      %p543 = scmp.le.s32.totalorder 2, %s12
      // Predicated region
      $region53: #{tpu_custom_call.1} parent=5 // pred_check
        %p544 = pneg %p543
      $region54: #{tpu_custom_call.1} parent=5 // pred_check_branch
        %546 = sbr.rel (%p544) target = $region56
      $region55: #{tpu_custom_call.1} parent=5 // pred_region
        %s547 = ssub.s32 %s12, 2
      $region56: #{tpu_custom_call.1} parent=5 // pred_fallthru
        _
    $region6: #{tpu_custom_call.1} parent=1 // loop_footer
      %s16 = sadd.s32 1, %s12
    $region7: #{tpu_custom_call.1} parent=1 // loop_footer_branch
      %11 = sbr.rel target = $region3
    $region8: #{tpu_custom_call.1} parent=1 // loop_exit
      _
    %548 = vsyncpa [#allocation3], 1
    %s549 = scalar_lea.sflag [#allocation3], 1
    %550 = vsyncpa %s549, 1
    %551 = vsyncpa [#allocation6], 1
    %552 = vsyncpa [#allocation4], 1
    %s553 = scalar_lea.sflag [#allocation4], 1
    %554 = vsyncpa %s553, 1

</llo_original>
